<compile_context>
chip_gen: v7x
topology: tpu7x:2x2x1
jax: 0.10.0
libtpu: 0.0.40
codegen_flags: <defaults>
</compile_context>

<pallas_src>
import functools

import jax
import jax.numpy as jnp
from jax.experimental import pallas as pl
from jax.experimental.pallas import tpu as pltpu

_BN_EPS = 1e-5


def _round_up(n, m):
    return ((n + m - 1) // m) * m


def _prediction_head_kernel(x_ref, w1_ref, g1_ref, bt1_ref,
                            w2_ref, g2_ref, bt2_ref, o_ref, *, b_valid):
    """x_ref: (Bp, Dinp) bf16; weights bf16; gammas/betas f32; o_ref f32."""
    inv_b = 1.0 / b_valid

    # ---- fc[0]: Linear (bias folded away by training-mode BN) ----
    h = jnp.dot(x_ref[...], w1_ref[...],
                preferred_element_type=jnp.float32)            # (Bp, Hp) f32

    # ---- fc[1]: BatchNorm1d(hidden) — one-pass stats, fused affine ----
    # Padded rows of h are exactly 0 (zero x rows, no bias), so summing over
    # all Bp rows and dividing by the true batch size is exact.
    mean1 = jnp.sum(h, axis=0, keepdims=True) * inv_b
    ex2_1 = jnp.sum(h * h, axis=0, keepdims=True) * inv_b
    var1 = jnp.maximum(ex2_1 - mean1 * mean1, 0.0)
    scale1 = g1_ref[...] * jax.lax.rsqrt(var1 + _BN_EPS)
    shift1 = bt1_ref[...] - mean1 * scale1

    # ---- fc[2]: ReLU (fused with BN affine) + padded-row mask ----
    row = jax.lax.broadcasted_iota(jnp.int32, h.shape, 0)
    h = jnp.where(row < b_valid, jnp.maximum(h * scale1 + shift1, 0.0), 0.0)

    # ---- fc[3]: Linear(hidden, output) ----
    o = jnp.dot(h.astype(jnp.bfloat16), w2_ref[...],
                preferred_element_type=jnp.float32)            # (Bp, Doutp) f32

    # ---- fc[4]: BatchNorm1d(output) ----
    mean2 = jnp.sum(o, axis=0, keepdims=True) * inv_b
    ex2_2 = jnp.sum(o * o, axis=0, keepdims=True) * inv_b
    var2 = jnp.maximum(ex2_2 - mean2 * mean2, 0.0)
    scale2 = g2_ref[...] * jax.lax.rsqrt(var2 + _BN_EPS)
    shift2 = bt2_ref[...] - mean2 * scale2

    o_ref[...] = o * scale2 + shift2                           # lane-dense store


def prediction_head_forward(x, kparams):
    """x: (B, input_dim) float32. kparams: padded kernel params (pack_params)."""
    B, din = x.shape
    dinp, hp = kparams["w1"].shape
    doutp = kparams["w2"].shape[1]
    dout = kparams["output_dim"]

    # Pad batch to a multiple of 16 (bf16 sublane packing) and cast to bf16.
    bp = max(16, _round_up(B, 16))
    xp = jnp.zeros((bp, dinp), jnp.bfloat16).at[:B, :din].set(
        x.astype(jnp.bfloat16))

    flops = 2 * bp * (dinp * hp + hp * doutp)
    bytes_accessed = (2 * (bp * dinp + dinp * hp + hp * doutp)   # bf16 inputs
                      + 4 * (2 * hp + 2 * doutp)                 # f32 gammas/betas
                      + 4 * bp * doutp)                          # f32 output

    vmem = pl.BlockSpec(memory_space=pltpu.MemorySpace.VMEM)
    out = pl.pallas_call(
        functools.partial(_prediction_head_kernel, b_valid=B),
        out_shape=jax.ShapeDtypeStruct((bp, doutp), jnp.float32),
        in_specs=[vmem] * 7,
        out_specs=vmem,
        compiler_params=pltpu.CompilerParams(vmem_limit_bytes=32 * 1024 * 1024),
        cost_estimate=pl.CostEstimate(flops=flops, transcendentals=0,
                                      bytes_accessed=bytes_accessed),
    )(xp, kparams["w1"], kparams["gamma1"], kparams["beta1"],
      kparams["w2"], kparams["gamma2"], kparams["beta2"])
    return out[:B, :dout]


def init_params(key, input_dim, hidden_dim, output_dim):
    """PyTorch-like f32 master params (weights pre-transposed to (in, out))."""
    k1, k2, k3, k4 = jax.random.split(key, 4)
    s1 = 1.0 / jnp.sqrt(input_dim)
    s2 = 1.0 / jnp.sqrt(hidden_dim)
    return {
        "w1": jax.random.uniform(k1, (input_dim, hidden_dim), jnp.float32, -s1, s1),
        "b1": jax.random.uniform(k2, (1, hidden_dim), jnp.float32, -s1, s1),
        "gamma1": jnp.ones((1, hidden_dim), jnp.float32),
        "beta1": jnp.zeros((1, hidden_dim), jnp.float32),
        "w2": jax.random.uniform(k3, (hidden_dim, output_dim), jnp.float32, -s2, s2),
        "b2": jax.random.uniform(k4, (1, output_dim), jnp.float32, -s2, s2),
        "gamma2": jnp.ones((1, output_dim), jnp.float32),
        "beta2": jnp.zeros((1, output_dim), jnp.float32),
    }


def pack_params(p):
    """Pad feature dims to multiples of 128 (lane-dense), weights -> bf16.

    Linear biases are intentionally dropped: they are algebraically cancelled
    by the training-mode BatchNorm mean subtraction.
    """
    din, dh = p["w1"].shape
    dout = p["w2"].shape[1]
    dinp, hp, doutp = _round_up(din, 128), _round_up(dh, 128), _round_up(dout, 128)

    def pad2(a, r, c):
        return jnp.zeros((r, c), a.dtype).at[:a.shape[0], :a.shape[1]].set(a)

    return {
        "w1": pad2(p["w1"], dinp, hp).astype(jnp.bfloat16),
        "gamma1": pad2(p["gamma1"], 1, hp),
        "beta1": pad2(p["beta1"], 1, hp),
        "w2": pad2(p["w2"], hp, doutp).astype(jnp.bfloat16),
        "gamma2": pad2(p["gamma2"], 1, doutp),
        "beta2": pad2(p["beta2"], 1, doutp),
        "output_dim": dout,
    }


def _reference_forward_f32(x, p):
    """Pure-f32 PyTorch semantics (training-mode BN, biases included)."""
    h = x @ p["w1"] + p["b1"]
    m = h.mean(0, keepdims=True)
    v = ((h - m) ** 2).mean(0, keepdims=True)
    h = (h - m) / jnp.sqrt(v + _BN_EPS) * p["gamma1"] + p["beta1"]
    h = jnp.maximum(h, 0.0)
    o = h @ p["w2"] + p["b2"]
    m = o.mean(0, keepdims=True)
    v = ((o - m) ** 2).mean(0, keepdims=True)
    return (o - m) / jnp.sqrt(v + _BN_EPS) * p["gamma2"] + p["beta2"]


def _reference_forward_bf16(x, p):
    """Same math as the kernel (bf16 matmul operands, biases cancelled)."""
    h = jnp.dot(x.astype(jnp.bfloat16), p["w1"].astype(jnp.bfloat16),
                preferred_element_type=jnp.float32)
    m = h.mean(0, keepdims=True)
    v = ((h - m) ** 2).mean(0, keepdims=True)
    h = (h - m) / jnp.sqrt(v + _BN_EPS) * p["gamma1"] + p["beta1"]
    h = jnp.maximum(h, 0.0)
    o = jnp.dot(h.astype(jnp.bfloat16), p["w2"].astype(jnp.bfloat16),
                preferred_element_type=jnp.float32)
    m = o.mean(0, keepdims=True)
    v = ((o - m) ** 2).mean(0, keepdims=True)
    return (o - m) / jnp.sqrt(v + _BN_EPS) * p["gamma2"] + p["beta2"]


if __name__ == "__main__":
    B, INPUT_DIM, HIDDEN_DIM, OUTPUT_DIM = 8, 32, 64, 32

    key = jax.random.PRNGKey(0)
    kx, kp = jax.random.split(key)
    x = jax.random.normal(kx, (B, INPUT_DIM), jnp.float32)
    params = init_params(kp, INPUT_DIM, HIDDEN_DIM, OUTPUT_DIM)
    kparams = pack_params(params)

    out = prediction_head_forward(x, kparams)
    out = jax.block_until_ready(out)
    assert out.shape == (B, OUTPUT_DIM)

    # Structural check: same-precision reference (tight tolerance).
    ref_bf16 = _reference_forward_bf16(x, params)
    assert jnp.allclose(out, ref_bf16, atol=2e-3, rtol=2e-3), \
        "mismatch vs bf16-matmul reference"

    # Semantic check: full-f32 PyTorch semantics (bf16 matmul tolerance).
    ref_f32 = _reference_forward_f32(x, params)
    assert jnp.allclose(out, ref_f32, atol=1e-1, rtol=1e-1), \
        "mismatch vs f32 PyTorch-semantics reference"

    print("KERNEL_OK")
</pallas_src>

<mosaic_0001>
module attributes {stable_mosaic.version = 11 : i64} {
  func.func @_prediction_head_kernel(%arg0: memref<16x128xbf16, #tpu.memory_space<vmem>>, %arg1: memref<128x128xbf16, #tpu.memory_space<vmem>>, %arg2: memref<1x128xf32, #tpu.memory_space<vmem>>, %arg3: memref<1x128xf32, #tpu.memory_space<vmem>>, %arg4: memref<128x128xbf16, #tpu.memory_space<vmem>>, %arg5: memref<1x128xf32, #tpu.memory_space<vmem>>, %arg6: memref<1x128xf32, #tpu.memory_space<vmem>>, %arg7: memref<16x128xf32, #tpu.memory_space<vmem>>) attributes {dimension_semantics = [], scalar_prefetch = 0 : i64, scratch_operands = 0 : i64, tpu.core_type = #tpu.core_type<tc>} {
    %c0 = arith.constant 0 : index
    %c0_0 = arith.constant 0 : index
    %0 = vector.load %arg0[%c0, %c0_0] : memref<16x128xbf16, #tpu.memory_space<vmem>>, vector<16x128xbf16>
    %c0_1 = arith.constant 0 : index
    %c0_2 = arith.constant 0 : index
    %1 = vector.load %arg1[%c0_1, %c0_2] : memref<128x128xbf16, #tpu.memory_space<vmem>>, vector<128x128xbf16>
    %cst = arith.constant dense<0.000000e+00> : vector<16x128xf32>
    %2 = tpu.matmul %0, %1, %cst {dimension_numbers = #tpu.dot_dimension_numbers<[1], [0], [0], [1], [0, 0, 1, 1], [], []>} : vector<16x128xbf16>, vector<128x128xbf16>, vector<16x128xf32> -> vector<16x128xf32>
    %cst_3 = arith.constant dense<0.000000e+00> : vector<128xf32>
    %3 = vector.multi_reduction <add>, %2, %cst_3 [0] : vector<16x128xf32> to vector<128xf32>
    %4 = vector.shape_cast %3 : vector<128xf32> to vector<1x128xf32>
    %cst_4 = arith.constant 1.250000e-01 : f32
    %5 = vector.broadcast %cst_4 : f32 to vector<1x128xf32>
    %6 = arith.mulf %4, %5 : vector<1x128xf32>
    %7 = arith.mulf %2, %2 : vector<16x128xf32>
    %cst_5 = arith.constant dense<0.000000e+00> : vector<128xf32>
    %8 = vector.multi_reduction <add>, %7, %cst_5 [0] : vector<16x128xf32> to vector<128xf32>
    %9 = vector.shape_cast %8 : vector<128xf32> to vector<1x128xf32>
    %cst_6 = arith.constant 1.250000e-01 : f32
    %10 = vector.broadcast %cst_6 : f32 to vector<1x128xf32>
    %11 = arith.mulf %9, %10 : vector<1x128xf32>
    %12 = arith.mulf %6, %6 : vector<1x128xf32>
    %13 = arith.subf %11, %12 : vector<1x128xf32>
    %cst_7 = arith.constant 0.000000e+00 : f32
    %14 = vector.broadcast %cst_7 : f32 to vector<1x128xf32>
    %15 = arith.maximumf %13, %14 : vector<1x128xf32>
    %c0_8 = arith.constant 0 : index
    %c0_9 = arith.constant 0 : index
    %16 = vector.load %arg2[%c0_8, %c0_9] : memref<1x128xf32, #tpu.memory_space<vmem>>, vector<1x128xf32>
    %cst_10 = arith.constant 9.99999974E-6 : f32
    %17 = vector.broadcast %cst_10 : f32 to vector<1x128xf32>
    %18 = arith.addf %15, %17 : vector<1x128xf32>
    %19 = math.rsqrt %18 : vector<1x128xf32>
    %20 = arith.mulf %16, %19 : vector<1x128xf32>
    %c0_11 = arith.constant 0 : index
    %c0_12 = arith.constant 0 : index
    %21 = vector.load %arg3[%c0_11, %c0_12] : memref<1x128xf32, #tpu.memory_space<vmem>>, vector<1x128xf32>
    %22 = arith.mulf %6, %20 : vector<1x128xf32>
    %23 = arith.subf %21, %22 : vector<1x128xf32>
    %24 = tpu.iota {dimensions = array<i32: 0>} : vector<16x128xi32>
    %c8_i32 = arith.constant 8 : i32
    %25 = vector.broadcast %c8_i32 : i32 to vector<16x128xi32>
    %26 = arith.cmpi slt, %24, %25 : vector<16x128xi32>
    %27 = vector.broadcast %20 : vector<1x128xf32> to vector<16x128xf32>
    %28 = arith.mulf %2, %27 : vector<16x128xf32>
    %29 = vector.broadcast %23 : vector<1x128xf32> to vector<16x128xf32>
    %30 = arith.addf %28, %29 : vector<16x128xf32>
    %cst_13 = arith.constant 0.000000e+00 : f32
    %31 = vector.broadcast %cst_13 : f32 to vector<16x128xf32>
    %32 = arith.maximumf %30, %31 : vector<16x128xf32>
    %cst_14 = arith.constant 0.000000e+00 : f32
    %33 = vector.broadcast %cst_14 : f32 to vector<16x128xf32>
    %34 = arith.select %26, %32, %33 : vector<16x128xi1>, vector<16x128xf32>
    %35 = arith.truncf %34 : vector<16x128xf32> to vector<16x128xbf16>
    %c0_15 = arith.constant 0 : index
    %c0_16 = arith.constant 0 : index
    %36 = vector.load %arg4[%c0_15, %c0_16] : memref<128x128xbf16, #tpu.memory_space<vmem>>, vector<128x128xbf16>
    %cst_17 = arith.constant dense<0.000000e+00> : vector<16x128xf32>
    %37 = tpu.matmul %35, %36, %cst_17 {dimension_numbers = #tpu.dot_dimension_numbers<[1], [0], [0], [1], [0, 0, 1, 1], [], []>} : vector<16x128xbf16>, vector<128x128xbf16>, vector<16x128xf32> -> vector<16x128xf32>
    %cst_18 = arith.constant dense<0.000000e+00> : vector<128xf32>
    %38 = vector.multi_reduction <add>, %37, %cst_18 [0] : vector<16x128xf32> to vector<128xf32>
    %39 = vector.shape_cast %38 : vector<128xf32> to vector<1x128xf32>
    %cst_19 = arith.constant 1.250000e-01 : f32
    %40 = vector.broadcast %cst_19 : f32 to vector<1x128xf32>
    %41 = arith.mulf %39, %40 : vector<1x128xf32>
    %42 = arith.mulf %37, %37 : vector<16x128xf32>
    %cst_20 = arith.constant dense<0.000000e+00> : vector<128xf32>
    %43 = vector.multi_reduction <add>, %42, %cst_20 [0] : vector<16x128xf32> to vector<128xf32>
    %44 = vector.shape_cast %43 : vector<128xf32> to vector<1x128xf32>
    %cst_21 = arith.constant 1.250000e-01 : f32
    %45 = vector.broadcast %cst_21 : f32 to vector<1x128xf32>
    %46 = arith.mulf %44, %45 : vector<1x128xf32>
    %47 = arith.mulf %41, %41 : vector<1x128xf32>
    %48 = arith.subf %46, %47 : vector<1x128xf32>
    %cst_22 = arith.constant 0.000000e+00 : f32
    %49 = vector.broadcast %cst_22 : f32 to vector<1x128xf32>
    %50 = arith.maximumf %48, %49 : vector<1x128xf32>
    %c0_23 = arith.constant 0 : index
    %c0_24 = arith.constant 0 : index
    %51 = vector.load %arg5[%c0_23, %c0_24] : memref<1x128xf32, #tpu.memory_space<vmem>>, vector<1x128xf32>
    %cst_25 = arith.constant 9.99999974E-6 : f32
    %52 = vector.broadcast %cst_25 : f32 to vector<1x128xf32>
    %53 = arith.addf %50, %52 : vector<1x128xf32>
    %54 = math.rsqrt %53 : vector<1x128xf32>
    %55 = arith.mulf %51, %54 : vector<1x128xf32>
    %c0_26 = arith.constant 0 : index
    %c0_27 = arith.constant 0 : index
    %56 = vector.load %arg6[%c0_26, %c0_27] : memref<1x128xf32, #tpu.memory_space<vmem>>, vector<1x128xf32>
    %57 = arith.mulf %41, %55 : vector<1x128xf32>
    %58 = arith.subf %56, %57 : vector<1x128xf32>
    %59 = vector.broadcast %55 : vector<1x128xf32> to vector<16x128xf32>
    %60 = arith.mulf %37, %59 : vector<16x128xf32>
    %61 = vector.broadcast %58 : vector<1x128xf32> to vector<16x128xf32>
    %62 = arith.addf %60, %61 : vector<16x128xf32>
    %c0_28 = arith.constant 0 : index
    %c0_29 = arith.constant 0 : index
    %63 = vector.load %arg7[%c0_28, %c0_29] : memref<16x128xf32, #tpu.memory_space<vmem>>, vector<16x128xf32>
    tpu.vector_store %arg7[%c0_28, %c0_29], %62 {strides = array<i32>} : memref<16x128xf32, #tpu.memory_space<vmem>>, vector<16x128xf32>,
    return
  }
}

</mosaic_0001>

<llo_original>
// kernel: tpu_custom_call.1
$region0: #{tpu_custom_call.1}
  #allocation0 [shape = 'u32[]', space=smem, size = 0x4, offset = 0x4, fixed_abs, tag = 'smem constant byte address 0x4 - core index']
  #allocation1 [shape = 'u32[144,128]{1,0:T(1,128)}', space=vmem, size = 0x12000, scoped, tag = 'internal scratch']
  %s0 = inlined_call_operand.hbm [shape: bf16[16,128], index: 0, kind: input, shape index: {}]
  %s1 = inlined_call_operand.hbm [shape: bf16[128,128], index: 1, kind: input, shape index: {}]
  %s2 = inlined_call_operand.vmem [shape: f32[1,128], index: 2, kind: input, shape index: {}]
  %s3 = inlined_call_operand.vmem [shape: f32[1,128], index: 3, kind: input, shape index: {}]
  %s4 = inlined_call_operand.hbm [shape: bf16[128,128], index: 4, kind: input, shape index: {}]
  %s5 = inlined_call_operand.vmem [shape: f32[1,128], index: 5, kind: input, shape index: {}]
  %s6 = inlined_call_operand.vmem [shape: f32[1,128], index: 6, kind: input, shape index: {}]
  %s7 = inlined_call_operand.hbm [shape: f32[16,128], index: 7, kind: output, shape index: {}]
  %s8 = sld [smem:[#allocation0]]
  $region50: #{tpu_custom_call.1} parent=0
    _
  %s10 = ssub.s32 1, %s8
  %s11 = scalar_select 0, %s10, %s8
  $region1: #{tpu_custom_call.1} parent=0
    #allocation2 [shape = 'u8[4096]{0}', space=vmem, size = 0x1000, scoped, tag = 'input window, operand 0, single buffered']
    #allocation3 [shape = 's32[1]{0}', space=sflag, size = 0x4, scoped, tag = 'scoped memory for tpu_custom_call.1']
    #allocation4 [shape = 's32[1]{0}', space=sflag, size = 0x4, scoped, tag = 'scoped memory for tpu_custom_call.1']
    #allocation5 [shape = 'u8[32768]{0}', space=vmem, size = 0x8000, scoped, tag = 'input window, operand 1, single buffered']
    #allocation6 [shape = 's32[1]{0}', space=sflag, size = 0x4, scoped, tag = 'scoped memory for tpu_custom_call.1']
    #allocation7 [shape = 'u8[32768]{0}', space=vmem, size = 0x8000, scoped, tag = 'input window, operand 4, single buffered']
    #allocation8 [shape = 'u8[8192]{0}', space=vmem, size = 0x2000, scoped, tag = 'output window, operand 0, single buffered']
    %12 = vsyncpa [#allocation3], 0
    %13 = vsyncpa [#allocation6], 0
    %14 = vsyncpa [#allocation4], 0
    // Predicated region
    $region2: #{tpu_custom_call.1} parent=1 // pred_check
      _
    $region3: #{tpu_custom_call.1} parent=1 // pred_check_branch
      %16 = sbr.rel (0) target = $region5
    $region4: #{tpu_custom_call.1} parent=1 // pred_region
      %s18 = ssub.s32 128, 128
      %19 = vsyncadd [#allocation3], %s18
      %s20 = sshll.u32 [#allocation2], 4
      %s21 = int_to_ptr.vmem [resolvable:$true] %s20
      %26 = dma.hbm_to_vmem [thread:$0]  %s0, 128, %s21, [#allocation3], 64, 64, 4
    $region5: #{tpu_custom_call.1} parent=1 // pred_fallthru
      _
    // Predicated region
    $region6: #{tpu_custom_call.1} parent=1 // pred_check
      _
    $region7: #{tpu_custom_call.1} parent=1 // pred_check_branch
      %28 = sbr.rel (0) target = $region9
    $region8: #{tpu_custom_call.1} parent=1 // pred_region
      %s30 = ssub.s32 1024, 1024
      %31 = vsyncadd [#allocation6], %s30
      %s32 = sshll.u32 [#allocation5], 4
      %s33 = int_to_ptr.vmem [resolvable:$true] %s32
      %38 = dma.hbm_to_vmem [thread:$0]  %s1, 1024, %s33, [#allocation6], 64, 64, 4
    $region9: #{tpu_custom_call.1} parent=1 // pred_fallthru
      _
    // Predicated region
    $region10: #{tpu_custom_call.1} parent=1 // pred_check
      _
    $region11: #{tpu_custom_call.1} parent=1 // pred_check_branch
      %40 = sbr.rel (0) target = $region13
    $region12: #{tpu_custom_call.1} parent=1 // pred_region
      _
    $region13: #{tpu_custom_call.1} parent=1 // pred_fallthru
      _
    // Predicated region
    $region14: #{tpu_custom_call.1} parent=1 // pred_check
      _
    $region15: #{tpu_custom_call.1} parent=1 // pred_check_branch
      %42 = sbr.rel (0) target = $region17
    $region16: #{tpu_custom_call.1} parent=1 // pred_region
      _
    $region17: #{tpu_custom_call.1} parent=1 // pred_fallthru
      _
    // Predicated region
    $region18: #{tpu_custom_call.1} parent=1 // pred_check
      _
    $region19: #{tpu_custom_call.1} parent=1 // pred_check_branch
      %44 = sbr.rel (0) target = $region21
    $region20: #{tpu_custom_call.1} parent=1 // pred_region
      %s46 = ssub.s32 1024, 1024
      %47 = vsyncadd [#allocation6], %s46
      %s48 = sshll.u32 [#allocation7], 4
      %s49 = int_to_ptr.vmem [resolvable:$true] %s48
      %54 = dma.hbm_to_vmem [thread:$0]  %s4, 1024, %s49, [#allocation6], 64, 64, 4
    $region21: #{tpu_custom_call.1} parent=1 // pred_fallthru
      _
    // Predicated region
    $region22: #{tpu_custom_call.1} parent=1 // pred_check
      _
    $region23: #{tpu_custom_call.1} parent=1 // pred_check_branch
      %56 = sbr.rel (0) target = $region25
    $region24: #{tpu_custom_call.1} parent=1 // pred_region
      _
    $region25: #{tpu_custom_call.1} parent=1 // pred_fallthru
      _
    // Predicated region
    $region26: #{tpu_custom_call.1} parent=1 // pred_check
      _
    $region27: #{tpu_custom_call.1} parent=1 // pred_check_branch
      %58 = sbr.rel (0) target = $region29
    $region28: #{tpu_custom_call.1} parent=1 // pred_region
      _
    $region29: #{tpu_custom_call.1} parent=1 // pred_fallthru
      _
    // Predicated region
    $region30: #{tpu_custom_call.1} parent=1 // pred_check
      _
    $region31: #{tpu_custom_call.1} parent=1 // pred_check_branch
      %60 = sbr.rel (0) target = $region33
    $region32: #{tpu_custom_call.1} parent=1 // pred_region
      %61 = dma.done [#allocation3], 128
    $region33: #{tpu_custom_call.1} parent=1 // pred_fallthru
      _
    // Predicated region
    $region34: #{tpu_custom_call.1} parent=1 // pred_check
      _
    $region35: #{tpu_custom_call.1} parent=1 // pred_check_branch
      %63 = sbr.rel (0) target = $region37
    $region36: #{tpu_custom_call.1} parent=1 // pred_region
      %64 = dma.done [#allocation6], 1024
    $region37: #{tpu_custom_call.1} parent=1 // pred_fallthru
      _
    // Predicated region
    $region38: #{tpu_custom_call.1} parent=1 // pred_check
      _
    $region39: #{tpu_custom_call.1} parent=1 // pred_check_branch
      %66 = sbr.rel (0) target = $region41
    $region40: #{tpu_custom_call.1} parent=1 // pred_region
      %67 = dma.done [#allocation6], 1024
    $region41: #{tpu_custom_call.1} parent=1 // pred_fallthru
      _
    %v69 = vld [vmem:[#allocation2] sm:$0xf]
    %v70 = vld [vmem:[#allocation2 + $0x4] sm:$0xf]
    %v71 = vld [vmem:[#allocation5] sm:$0xf]
    %v72 = vld [vmem:[#allocation5 + $0x4] sm:$0xf]
    %v73 = vld [vmem:[#allocation5 + $0x8] sm:$0xf]
    %v74 = vld [vmem:[#allocation5 + $0xc] sm:$0xf]
    %v75 = vld [vmem:[#allocation5 + $0x10] sm:$0xf]
    %v76 = vld [vmem:[#allocation5 + $0x14] sm:$0xf]
    %v77 = vld [vmem:[#allocation5 + $0x18] sm:$0xf]
    %v78 = vld [vmem:[#allocation5 + $0x1c] sm:$0xf]
    %v79 = vld [vmem:[#allocation5 + $0x20] sm:$0xf]
    %v80 = vld [vmem:[#allocation5 + $0x24] sm:$0xf]
    %v81 = vld [vmem:[#allocation5 + $0x28] sm:$0xf]
    %v82 = vld [vmem:[#allocation5 + $0x2c] sm:$0xf]
    %v83 = vld [vmem:[#allocation5 + $0x30] sm:$0xf]
    %v84 = vld [vmem:[#allocation5 + $0x34] sm:$0xf]
    %v85 = vld [vmem:[#allocation5 + $0x38] sm:$0xf]
    %v86 = vld [vmem:[#allocation5 + $0x3c] sm:$0xf]
    %v89 = vunpack.c.l.b16 %v69
    %v90 = vunpack.c.l.b16 %v70
    %v91 = vpack.c.b16 %v90, %v89
    %v109 = vunpack.c.l.b16 %v71
    %v110 = vunpack.c.l.b16 %v72
    %v111 = vunpack.c.l.b16 %v73
    %v112 = vunpack.c.l.b16 %v74
    %v113 = vunpack.c.l.b16 %v75
    %v114 = vunpack.c.l.b16 %v76
    %v115 = vunpack.c.l.b16 %v77
    %v116 = vunpack.c.l.b16 %v78
    %v117 = vunpack.c.l.b16 %v79
    %v118 = vunpack.c.l.b16 %v80
    %v119 = vunpack.c.l.b16 %v81
    %v120 = vunpack.c.l.b16 %v82
    %v121 = vunpack.c.l.b16 %v83
    %v122 = vunpack.c.l.b16 %v84
    %v123 = vunpack.c.l.b16 %v85
    %v124 = vunpack.c.l.b16 %v86
    %v125 = vpack.c.b16 %v110, %v109
    %v126 = vpack.c.b16 %v112, %v111
    %v127 = vpack.c.b16 %v114, %v113
    %v128 = vpack.c.b16 %v116, %v115
    %v129 = vpack.c.b16 %v118, %v117
    %v130 = vpack.c.b16 %v120, %v119
    %v131 = vpack.c.b16 %v122, %v121
    %v132 = vpack.c.b16 %v124, %v123
    %141 = vmatprep.subr.bf16.mxu0 0
    %142 = vmatpush1.bf16.msra.mxu0 %v125
    %143 = vmatprep.subr.bf16.mxu0 0
    %144 = vmatpush1.bf16.msra.mxu0 %v126
    %145 = vmatprep.subr.bf16.mxu0 0
    %146 = vmatpush1.bf16.msra.mxu0 %v127
    %147 = vmatprep.subr.bf16.mxu0 0
    %148 = vmatpush1.bf16.msra.mxu0 %v128
    %149 = vmatprep.subr.bf16.mxu0 0
    %150 = vmatpush1.bf16.msra.mxu0 %v129
    %151 = vmatprep.subr.bf16.mxu0 0
    %152 = vmatpush1.bf16.msra.mxu0 %v130
    %153 = vmatprep.subr.bf16.mxu0 0
    %154 = vmatpush1.bf16.msra.mxu0 %v131
    %155 = vmatprep.subr.bf16.mxu0 0
    %156 = vmatpush1.bf16.msra.mxu0 %v132
    %157 = vmatprep.subr.bf16.mxu0 0
    %158 = vmatpush1.bf16.msra.mxu0 0
    %159 = vmatprep.subr.bf16.mxu0 0
    %160 = vmatpush1.bf16.msra.mxu0 0
    %161 = vmatprep.subr.bf16.mxu0 0
    %162 = vmatpush1.bf16.msra.mxu0 0
    %163 = vmatprep.subr.bf16.mxu0 0
    %164 = vmatpush1.bf16.msra.mxu0 0
    %165 = vmatprep.subr.bf16.mxu0 0
    %166 = vmatpush1.bf16.msra.mxu0 0
    %167 = vmatprep.subr.bf16.mxu0 0
    %168 = vmatpush1.bf16.msra.mxu0 0
    %169 = vmatprep.subr.bf16.mxu0 0
    %170 = vmatpush1.bf16.msra.mxu0 0
    %171 = vmatprep.subr.bf16.mxu0 0
    %172 = vmatpush1.bf16.msra.mxu0 0
    %173 = vmatprep.mubr.bf16.mxu0 0
    %174 = vmatmul.mubr.bf16.gmra.mrb[0].mxu0 %v91
    %v175 = vpop.f32.mrb[0].mxu0
    %v176 = vadd.f32 0.0, %v175
    %v177 = vpop.f32.mrb[0].mxu0
    %v178 = vpop.f32.mrb[0].mxu0
    %v179 = vadd.f32 0.0, %v178
    %v180 = vpop.f32.mrb[0].mxu0
    %181 = vdwg.mxu0
    %v182 = vadd.f32 %v176, %v179
    %v183 = vrot.slane %v182, 4
    %v184 = vadd.f32 %v182, %v183
    %v185 = vrot.slane %v184, 2
    %v186 = vadd.f32 %v184, %v185
    %v187 = vrot.slane %v186, 1
    %v188 = vadd.f32 %v186, %v187
    %v189 = vmul.f32 %v188, 0.125
    %v190 = vmul.f32 %v176, %v176
    %v191 = vmul.f32 %v179, %v179
    %v192 = vadd.f32 %v190, %v191
    %v193 = vrot.slane %v192, 4
    %v194 = vadd.f32 %v192, %v193
    %v195 = vrot.slane %v194, 2
    %v196 = vadd.f32 %v194, %v195
    %v197 = vrot.slane %v196, 1
    %v198 = vadd.f32 %v196, %v197
    %v199 = vmul.f32 %v198, 0.125
    %v200 = vmul.f32 %v189, %v189
    %v201 = vsub.f32 %v199, %v200
    %v202 = vmax.f32 %v201, 0.0
    %v203 = vld [vmem:[%s2] sm:$0x1]
    %v204 = vadd.f32 %v202, 1e-05
    %v205 = vrsqrt.pop %v204
    %v206 = vmul.f32 %v203, %v205
    %v207 = vld [vmem:[%s3] sm:$0x1]
    %v208 = vmul.f32 %v189, %v206
    %v209 = vsub.f32 %v207, %v208
    %v210 = vlaneseq
    %v211 = vshrl.u32 %v210, 7
    %v212 = vadd.s32 %v211, 8
    %vm213 = vcmp.lt.s32.totalorder %v211, 8
    %vm214 = vcmp.lt.s32.totalorder %v212, 8
    %v216 = vlaneseq
    %v217 = vshrl.u32 %v216, 7
    %v218 = vsub.s32 0, %v217
    %v219 = vrot.slane %v206, %v218
    %v221 = vmul.f32 %v176, %v219
    %v222 = vmul.f32 %v179, %v219
    %v224 = vlaneseq
    %v225 = vshrl.u32 %v224, 7
    %v226 = vsub.s32 0, %v225
    %v227 = vrot.slane %v209, %v226
    %v229 = vadd.f32 %v221, %v227
    %v230 = vadd.f32 %v222, %v227
    %v231 = vmax.f32 %v229, 0.0
    %v232 = vmax.f32 %v230, 0.0
    %v233 = vsel %vm213, %v231, 0.0
    %v234 = vsel %vm214, %v232, 0.0
    %v235 = vpack.c.bf16 %v234, %v233
    %v236 = vld [vmem:[#allocation7] sm:$0xf]
    %v237 = vld [vmem:[#allocation7 + $0x4] sm:$0xf]
    %v238 = vld [vmem:[#allocation7 + $0x8] sm:$0xf]
    %v239 = vld [vmem:[#allocation7 + $0xc] sm:$0xf]
    %v240 = vld [vmem:[#allocation7 + $0x10] sm:$0xf]
    %v241 = vld [vmem:[#allocation7 + $0x14] sm:$0xf]
    %v242 = vld [vmem:[#allocation7 + $0x18] sm:$0xf]
    %v243 = vld [vmem:[#allocation7 + $0x1c] sm:$0xf]
    %v244 = vld [vmem:[#allocation7 + $0x20] sm:$0xf]
    %v245 = vld [vmem:[#allocation7 + $0x24] sm:$0xf]
    %v246 = vld [vmem:[#allocation7 + $0x28] sm:$0xf]
    %v247 = vld [vmem:[#allocation7 + $0x2c] sm:$0xf]
    %v248 = vld [vmem:[#allocation7 + $0x30] sm:$0xf]
    %v249 = vld [vmem:[#allocation7 + $0x34] sm:$0xf]
    %v250 = vld [vmem:[#allocation7 + $0x38] sm:$0xf]
    %v251 = vld [vmem:[#allocation7 + $0x3c] sm:$0xf]
    %v268 = vunpack.c.l.b16 %v236
    %v269 = vunpack.c.l.b16 %v237
    %v270 = vunpack.c.l.b16 %v238
    %v271 = vunpack.c.l.b16 %v239
    %v272 = vunpack.c.l.b16 %v240
    %v273 = vunpack.c.l.b16 %v241
    %v274 = vunpack.c.l.b16 %v242
    %v275 = vunpack.c.l.b16 %v243
    %v276 = vunpack.c.l.b16 %v244
    %v277 = vunpack.c.l.b16 %v245
    %v278 = vunpack.c.l.b16 %v246
    %v279 = vunpack.c.l.b16 %v247
    %v280 = vunpack.c.l.b16 %v248
    %v281 = vunpack.c.l.b16 %v249
    %v282 = vunpack.c.l.b16 %v250
    %v283 = vunpack.c.l.b16 %v251
    %v284 = vpack.c.b16 %v269, %v268
    %v285 = vpack.c.b16 %v271, %v270
    %v286 = vpack.c.b16 %v273, %v272
    %v287 = vpack.c.b16 %v275, %v274
    %v288 = vpack.c.b16 %v277, %v276
    %v289 = vpack.c.b16 %v279, %v278
    %v290 = vpack.c.b16 %v281, %v280
    %v291 = vpack.c.b16 %v283, %v282
    %300 = vmatprep.subr.bf16.mxu0 0
    %301 = vmatpush1.bf16.msra.mxu0 %v284
    %302 = vmatprep.subr.bf16.mxu0 0
    %303 = vmatpush1.bf16.msra.mxu0 %v285
    %304 = vmatprep.subr.bf16.mxu0 0
    %305 = vmatpush1.bf16.msra.mxu0 %v286
    %306 = vmatprep.subr.bf16.mxu0 0
    %307 = vmatpush1.bf16.msra.mxu0 %v287
    %308 = vmatprep.subr.bf16.mxu0 0
    %309 = vmatpush1.bf16.msra.mxu0 %v288
    %310 = vmatprep.subr.bf16.mxu0 0
    %311 = vmatpush1.bf16.msra.mxu0 %v289
    %312 = vmatprep.subr.bf16.mxu0 0
    %313 = vmatpush1.bf16.msra.mxu0 %v290
    %314 = vmatprep.subr.bf16.mxu0 0
    %315 = vmatpush1.bf16.msra.mxu0 %v291
    %316 = vmatprep.subr.bf16.mxu0 0
    %317 = vmatpush1.bf16.msra.mxu0 0
    %318 = vmatprep.subr.bf16.mxu0 0
    %319 = vmatpush1.bf16.msra.mxu0 0
    %320 = vmatprep.subr.bf16.mxu0 0
    %321 = vmatpush1.bf16.msra.mxu0 0
    %322 = vmatprep.subr.bf16.mxu0 0
    %323 = vmatpush1.bf16.msra.mxu0 0
    %324 = vmatprep.subr.bf16.mxu0 0
    %325 = vmatpush1.bf16.msra.mxu0 0
    %326 = vmatprep.subr.bf16.mxu0 0
    %327 = vmatpush1.bf16.msra.mxu0 0
    %328 = vmatprep.subr.bf16.mxu0 0
    %329 = vmatpush1.bf16.msra.mxu0 0
    %330 = vmatprep.subr.bf16.mxu0 0
    %331 = vmatpush1.bf16.msra.mxu0 0
    %332 = vmatprep.mubr.bf16.mxu0 0
    %333 = vmatmul.mubr.bf16.gmra.mrb[0].mxu0 %v235
    %v334 = vpop.f32.mrb[0].mxu0
    %v335 = vadd.f32 0.0, %v334
    %v336 = vpop.f32.mrb[0].mxu0
    %v337 = vpop.f32.mrb[0].mxu0
    %v338 = vadd.f32 0.0, %v337
    %v339 = vpop.f32.mrb[0].mxu0
    %340 = vdwg.mxu0
    %v341 = vadd.f32 %v335, %v338
    %v342 = vrot.slane %v341, 4
    %v343 = vadd.f32 %v341, %v342
    %v344 = vrot.slane %v343, 2
    %v345 = vadd.f32 %v343, %v344
    %v346 = vrot.slane %v345, 1
    %v347 = vadd.f32 %v345, %v346
    %v348 = vmul.f32 %v347, 0.125
    %v349 = vmul.f32 %v335, %v335
    %v350 = vmul.f32 %v338, %v338
    %v351 = vadd.f32 %v349, %v350
    %v352 = vrot.slane %v351, 4
    %v353 = vadd.f32 %v351, %v352
    %v354 = vrot.slane %v353, 2
    %v355 = vadd.f32 %v353, %v354
    %v356 = vrot.slane %v355, 1
    %v357 = vadd.f32 %v355, %v356
    %v358 = vmul.f32 %v357, 0.125
    %v359 = vmul.f32 %v348, %v348
    %v360 = vsub.f32 %v358, %v359
    %v361 = vmax.f32 %v360, 0.0
    %v362 = vld [vmem:[%s5] sm:$0x1]
    %v363 = vadd.f32 %v361, 1e-05
    %v364 = vrsqrt.pop %v363
    %v365 = vmul.f32 %v362, %v364
    %v366 = vld [vmem:[%s6] sm:$0x1]
    %v367 = vmul.f32 %v348, %v365
    %v368 = vsub.f32 %v366, %v367
    %v370 = vlaneseq
    %v371 = vshrl.u32 %v370, 7
    %v372 = vsub.s32 0, %v371
    %v373 = vrot.slane %v365, %v372
    %v375 = vmul.f32 %v335, %v373
    %v376 = vmul.f32 %v338, %v373
    %v378 = vlaneseq
    %v379 = vshrl.u32 %v378, 7
    %v380 = vsub.s32 0, %v379
    %v381 = vrot.slane %v368, %v380
    %v383 = vadd.f32 %v375, %v381
    %v384 = vadd.f32 %v376, %v381
    %385 = vst [vmem:[#allocation8] sm:$0xff] %v383
    %386 = vst [vmem:[#allocation8 + $0x8] sm:$0xff] %v384
    // Predicated region
    $region42: #{tpu_custom_call.1} parent=1 // pred_check
      _
    $region43: #{tpu_custom_call.1} parent=1 // pred_check_branch
      %388 = sbr.rel (0) target = $region45
    $region44: #{tpu_custom_call.1} parent=1 // pred_region
      %s390 = ssub.s32 256, 256
      %391 = vsyncadd [#allocation4], %s390
      %s392 = sshll.u32 [#allocation8], 4
      %s393 = int_to_ptr.vmem [resolvable:$true] %s392
      %398 = dma.vmem_to_hbm [thread:$0]  %s393, 256, %s7, [#allocation4], 128, 128, 8
    $region45: #{tpu_custom_call.1} parent=1 // pred_fallthru
      _
    // Predicated region
    $region46: #{tpu_custom_call.1} parent=1 // pred_check
      _
    $region47: #{tpu_custom_call.1} parent=1 // pred_check_branch
      %400 = sbr.rel (0) target = $region49
    $region48: #{tpu_custom_call.1} parent=1 // pred_region
      %401 = dma.done [#allocation4], 256
    $region49: #{tpu_custom_call.1} parent=1 // pred_fallthru
      _
    %402 = vsyncpa [#allocation3], 1
    %403 = vsyncpa [#allocation6], 1
    %404 = vsyncpa [#allocation4], 1

</llo_original>
